<compile_context>
chip_gen: v7x
topology: tpu7x:2x2x1
jax: 0.10.0
libtpu: 0.0.40
codegen_flags: <defaults>
</compile_context>

<pallas_src>
import functools

import numpy as np
import jax
import jax.numpy as jnp
from jax.experimental import pallas as pl
from jax.experimental.pallas import tpu as pltpu

LANE = 128            # TPU lane width; channels are padded to a multiple of this.
_MB = 1024 * 1024


def _round_up(x, m):
    return (x + m - 1) // m * m


def _clamp_vmem(est_bytes):
    """VMEM budget hint: >= default scoped 32MiB, <= 48MiB (safe on v7x's 64MiB)."""
    return int(min(48 * _MB, max(32 * _MB, 2 * int(est_bytes))))


def _bspec(shape, index_map, single_buffer=False):
    """BlockSpec; grid-constant operands get a single VMEM buffer when supported."""
    if single_buffer:
        try:
            return pl.BlockSpec(shape, index_map, pipeline_mode=pl.Buffered(1))
        except Exception:                  # older jax without pipeline_mode support
            pass
    return pl.BlockSpec(shape, index_map)


def _cout_tile(cout_p):
    # 256-wide tiles match the v6e/v7x 256x256 MXU; 128 matches v5e's 128x128.
    return 256 if cout_p % 256 == 0 else min(cout_p, 128)


# ----------------------------- Pallas kernels --------------------------------

def _conv3x3_kernel(x_ref, w_ref, b_ref, *rest, taps, cp, ho, wo, relu, has_res):
    """Fused 3x3 conv + folded-BN bias (+ residual add) (+ ReLU).

    x_ref : (Hq, Wq, P*cp)  phase-decomposed, spatially padded bf16 image
    w_ref : (9*cp, tco)     BN-scale-folded bf16 weights, tap-major rows
    b_ref : (1, tco)        f32 BN bias
    rest  : [r_ref (HW, tco)], o_ref (HW, tco)
    """
    if has_res:
        r_ref, o_ref = rest
    else:
        (o_ref,) = rest
    hw = ho * wo
    acc = None
    for t, (qy, qx, pc) in enumerate(taps):
        tap = x_ref[qy:qy + ho, qx:qx + wo, pc:pc + cp]          # (ho, wo, cp) bf16
        part = jnp.dot(tap.reshape(hw, cp),
                       w_ref[t * cp:(t + 1) * cp, :],
                       preferred_element_type=jnp.float32)       # MXU, f32 accumulate
        acc = part if acc is None else acc + part
    out = acc + b_ref[...]
    if has_res:
        out = out + r_ref[...].astype(jnp.float32)
    if relu:
        out = jnp.maximum(out, 0.0)
    o_ref[...] = out.astype(o_ref.dtype)


def _matmul_bias_kernel(x_ref, w_ref, b_ref, o_ref, *, relu):
    """out = [relu]( x @ w + bias ) -- used for the 1x1 downsample conv."""
    acc = jnp.dot(x_ref[...], w_ref[...], preferred_element_type=jnp.float32)
    out = acc + b_ref[...]
    if relu:
        out = jnp.maximum(out, 0.0)
    o_ref[...] = out.astype(o_ref.dtype)


# ----------------------------- kernel wrappers -------------------------------

def conv3x3_bn_act(x, w_flat, bias, stride, residual=None, relu=True,
                   out_dtype=jnp.bfloat16):
    """3x3 conv (pad=1, given stride) + folded BN + optional residual + ReLU.

    x        : (N, H, W, Cp) bf16, Cp a multiple of 128.
    w_flat   : (9*Cp, Cout_p) bf16, BN scale already folded in.
    bias     : (1, Cout_p) f32.
    residual : optional (N, Ho*Wo, Cout_p).
    Returns  : (N, Ho, Wo, Cout_p) in out_dtype.
    """
    n, h, w, cp = x.shape
    cout_p = w_flat.shape[1]
    s = int(stride)
    ho = (h - 1) // s + 1
    wo = (w - 1) // s + 1
    hw = ho * wo

    # conv pad of 1, plus bottom/right zeros so the padded dims divide the stride;
    # then a space-to-depth phase split so every conv tap becomes a static
    # contiguous window of one phase plane (handles stride with no strided or
    # dynamic in-kernel loads).  Total bytes == input bytes: no 9x im2col in HBM.
    hp = _round_up(h + 2, s)
    wp = _round_up(w + 2, s)
    xp = jnp.pad(x, ((0, 0), (1, hp - h - 1), (1, wp - w - 1), (0, 0)))
    hq, wq = hp // s, wp // s
    if s == 1:
        xph = xp
    else:
        xph = xp.reshape(n, hq, s, wq, s, cp).transpose(0, 1, 3, 2, 4, 5)
        xph = xph.reshape(n, hq, wq, s * s * cp)
    pc_tot = s * s * cp

    # tap t=(ky,kx): window offset (ky//s, kx//s) inside phase plane (ky%s, kx%s)
    taps = tuple((ky // s, kx // s, ((ky % s) * s + (kx % s)) * cp)
                 for ky in range(3) for kx in range(3))

    tco = _cout_tile(cout_p)
    n_co = cout_p // tco
    grid = (n, n_co)                    # both parallel -> >=2 steps for dual-TC v7x

    in_specs = [
        pl.BlockSpec((None, hq, wq, pc_tot), lambda i, j: (i, 0, 0, 0)),
        _bspec((9 * cp, tco), lambda i, j: (0, j), single_buffer=(n_co == 1)),
        _bspec((1, tco), lambda i, j: (0, j), single_buffer=(n_co == 1)),
    ]
    args = [xph, w_flat, bias]
    if residual is not None:
        in_specs.append(pl.BlockSpec((None, hw, tco), lambda i, j: (i, 0, j)))
        args.append(residual)
    out_specs = pl.BlockSpec((None, hw, tco), lambda i, j: (i, 0, j))

    kernel = functools.partial(_conv3x3_kernel, taps=taps, cp=cp, ho=ho, wo=wo,
                               relu=relu, has_res=residual is not None)

    est = (2 * hq * wq * pc_tot * 2                              # x (double-buffered bf16)
           + (1 if n_co == 1 else 2) * 9 * cp * tco * 2          # weights
           + 2 * hw * tco * np.dtype(out_dtype).itemsize         # output
           + (2 * hw * tco * residual.dtype.itemsize if residual is not None else 0)
           + hw * cp * 4 + 2 * hw * tco * 4)                     # in-kernel temporaries

    out = pl.pallas_call(
        kernel,
        out_shape=jax.ShapeDtypeStruct((n, hw, cout_p), out_dtype),
        grid_spec=pltpu.PrefetchScalarGridSpec(
            num_scalar_prefetch=0, grid=grid,
            in_specs=in_specs, out_specs=out_specs),
        compiler_params=pltpu.CompilerParams(
            dimension_semantics=("parallel", "parallel"),
            vmem_limit_bytes=_clamp_vmem(est)),
    )(*args)
    return out.reshape(n, ho, wo, cout_p)


def fused_matmul_bias(x2d, w2d, bias, relu=False, out_dtype=jnp.bfloat16):
    """(M,K)@(K,Cout_p) + bias [+ReLU]; bf16 MXU operands, f32 accumulate.

    Used for the 1x1-conv downsample.  M is cdiv-tiled (padded, never tiny tiles);
    K here is Cin_p (a 1x1 conv), small enough that no reduction grid is needed.
    """
    m, k = x2d.shape
    cout_p = w2d.shape[1]
    tm = min(512, _round_up(m, 8))
    mp = _round_up(m, tm)
    if mp != m:
        x2d = jnp.pad(x2d, ((0, mp - m), (0, 0)))
    tco = _cout_tile(cout_p)
    n_m, n_co = mp // tm, cout_p // tco

    est = (2 * tm * k * 2 + (1 if n_co == 1 else 2) * k * tco * 2
           + 2 * tm * tco * np.dtype(out_dtype).itemsize + 2 * tm * tco * 4)

    out = pl.pallas_call(
        functools.partial(_matmul_bias_kernel, relu=relu),
        out_shape=jax.ShapeDtypeStruct((mp, cout_p), out_dtype),
        grid_spec=pltpu.PrefetchScalarGridSpec(
            num_scalar_prefetch=0, grid=(n_m, n_co),
            in_specs=[
                pl.BlockSpec((tm, k), lambda i, j: (i, 0)),
                _bspec((k, tco), lambda i, j: (0, j), single_buffer=(n_co == 1)),
                _bspec((1, tco), lambda i, j: (0, j), single_buffer=(n_co == 1)),
            ],
            out_specs=pl.BlockSpec((tm, tco), lambda i, j: (i, j))),
        compiler_params=pltpu.CompilerParams(
            dimension_semantics=("parallel", "parallel"),
            vmem_limit_bytes=_clamp_vmem(est)),
    )(x2d, w2d, bias)
    return out[:m]


# ----------------------------- parameters ------------------------------------

def fold_bn(gamma, beta, mean, var, eps=1e-5):
    scale = gamma / jnp.sqrt(var + eps)
    bias = beta - mean * scale
    return scale, bias


def init_basic_block(key, cin, cout, stride):
    ks = jax.random.split(key, 16)
    p = {"stride": stride}
    p["w1"] = 0.1 * jax.random.normal(ks[0], (3, 3, cin, cout), jnp.float32)   # HWIO
    p["bn1"] = fold_bn(1.0 + 0.1 * jax.random.normal(ks[1], (cout,)),
                       0.1 * jax.random.normal(ks[2], (cout,)),
                       0.1 * jax.random.normal(ks[3], (cout,)),
                       0.5 + jax.random.uniform(ks[4], (cout,)))
    p["w2"] = 0.1 * jax.random.normal(ks[5], (3, 3, cout, cout), jnp.float32)
    p["bn2"] = fold_bn(1.0 + 0.1 * jax.random.normal(ks[6], (cout,)),
                       0.1 * jax.random.normal(ks[7], (cout,)),
                       0.1 * jax.random.normal(ks[8], (cout,)),
                       0.5 + jax.random.uniform(ks[9], (cout,)))
    if stride != 1:
        p["wd"] = 0.1 * jax.random.normal(ks[10], (cin, cout), jnp.float32)     # 1x1 conv
        p["bnd"] = fold_bn(1.0 + 0.1 * jax.random.normal(ks[11], (cout,)),
                           0.1 * jax.random.normal(ks[12], (cout,)),
                           0.1 * jax.random.normal(ks[13], (cout,)),
                           0.5 + jax.random.uniform(ks[14], (cout,)))
    return p


def init_blocks(key, inplanes, planes, blocks, stride):
    keys = jax.random.split(key, blocks)
    return [init_basic_block(keys[i],
                             inplanes if i == 0 else planes,
                             planes,
                             stride if i == 0 else 1)
            for i in range(blocks)]


def prepare_basic_block(p):
    """Fold BN scale into conv weights, zero-pad channels to LANE multiples,
    cast weights to bf16 and pre-flatten to the kernel layouts (trace-time only)."""
    s = int(p["stride"])
    _, _, cin, cout = p["w1"].shape
    cin_p, cout_p = _round_up(cin, LANE), _round_up(cout, LANE)
    # Matches PyTorch BasicBlock: no downsample is created at stride==1, so the
    # residual add requires inplanes == planes in that case (as in the reference).
    assert s != 1 or cin == cout, "stride==1 requires inplanes == planes"

    def fold3x3(w, bn, ci, ci_p, co, co_p):
        scale, bias = bn
        wf = jnp.pad(w * scale, ((0, 0), (0, 0), (0, ci_p - ci), (0, co_p - co)))
        wf = wf.reshape(9 * ci_p, co_p).astype(jnp.bfloat16)     # tap-major rows
        bf = jnp.pad(bias, (0, co_p - co)).reshape(1, co_p).astype(jnp.float32)
        return wf, bf

    w1, b1 = fold3x3(p["w1"], p["bn1"], cin, cin_p, cout, cout_p)
    w2, b2 = fold3x3(p["w2"], p["bn2"], cout, cout_p, cout, cout_p)
    bp = {"stride": s, "w1": w1, "b1": b1, "w2": w2, "b2": b2,
          "wd": None, "bd": None}
    if "wd" in p:
        scale, bias = p["bnd"]
        bp["wd"] = jnp.pad(p["wd"] * scale,
                           ((0, cin_p - cin), (0, cout_p - cout))).astype(jnp.bfloat16)
        bp["bd"] = jnp.pad(bias, (0, cout_p - cout)).reshape(1, cout_p).astype(jnp.float32)
    return bp


# ----------------------------- forward pass ----------------------------------

def basic_block_forward(x, bp):
    """x: (N, H, W, Cin_p) bf16 -> (N, Ho, Wo, Cout_p) bf16."""
    s = bp["stride"]
    n, h, w, cin_p = x.shape
    cout_p = bp["b1"].shape[-1]
    ho = (h - 1) // s + 1
    wo = (w - 1) // s + 1

    # identity / 1x1 downsample, flattened to (N, Ho*Wo, Cout_p) for the fused add.
    if bp["wd"] is not None:
        xs = x[:, ::s, ::s, :].reshape(n * ho * wo, cin_p)
        identity = fused_matmul_bias(xs, bp["wd"], bp["bd"], relu=False)
        identity = identity.reshape(n, ho * wo, cout_p)
    else:
        identity = x.reshape(n, ho * wo, cout_p)

    out1 = conv3x3_bn_act(x, bp["w1"], bp["b1"], stride=s, relu=True)
    out2 = conv3x3_bn_act(out1, bp["w2"], bp["b2"], stride=1,
                          residual=identity, relu=True)
    return out2


def blocks_forward(x_nchw, block_params, out_channels):
    x = jnp.transpose(x_nchw, (0, 2, 3, 1))                      # NCHW -> NHWC
    cin = x.shape[-1]
    x = jnp.pad(x, ((0, 0), (0, 0), (0, 0), (0, _round_up(cin, LANE) - cin)))
    x = x.astype(jnp.bfloat16)                                   # bf16 activations
    for bp in block_params:
        x = basic_block_forward(x, bp)
    x = x[..., :out_channels].astype(jnp.float32)                # strip channel padding
    return jnp.transpose(x, (0, 3, 1, 2))                        # back to NCHW


# ----------------------------- pure-JAX reference ----------------------------

def _conv_ref(x, w, stride, padding):
    return jax.lax.conv_general_dilated(
        x, w, (stride, stride), padding,
        dimension_numbers=("NHWC", "HWIO", "NHWC"),
        precision=jax.lax.Precision.HIGHEST)


def _block_ref(x, p):
    s = p["stride"]
    out = _conv_ref(x, p["w1"], s, [(1, 1), (1, 1)])
    out = out * p["bn1"][0] + p["bn1"][1]
    out = jnp.maximum(out, 0.0)
    out = _conv_ref(out, p["w2"], 1, [(1, 1), (1, 1)])
    out = out * p["bn2"][0] + p["bn2"][1]
    if s != 1:
        idn = _conv_ref(x, p["wd"].reshape(1, 1, *p["wd"].shape), s, [(0, 0), (0, 0)])
        idn = idn * p["bnd"][0] + p["bnd"][1]
    else:
        idn = x
    return jnp.maximum(out + idn, 0.0)


def blocks_ref(x_nchw, params):
    x = jnp.transpose(x_nchw, (0, 2, 3, 1))
    for p in params:
        x = _block_ref(x, p)
    return jnp.transpose(x, (0, 3, 1, 2))


# ----------------------------- main -------------------------------------------

if __name__ == "__main__":
    key = jax.random.PRNGKey(0)
    kx, kp = jax.random.split(key)

    # Blocks(inplanes=4, planes=8, blocks=2, stride=2)
    inplanes, planes, nblocks, stride = 4, 8, 2, 2
    x = jax.random.normal(kx, (2, inplanes, 16, 16), jnp.float32)   # NCHW like PyTorch

    raw_params = init_blocks(kp, inplanes, planes, nblocks, stride)
    block_params = [prepare_basic_block(p) for p in raw_params]

    out = jax.block_until_ready(blocks_forward(x, block_params, out_channels=planes))
    ref = jax.block_until_ready(blocks_ref(x, raw_params))

    assert out.shape == ref.shape == (2, planes, 16 // stride, 16 // stride), out.shape
    max_err = float(jnp.max(jnp.abs(out - ref)))
    assert jnp.allclose(out, ref, rtol=5e-2, atol=5e-2), f"max abs err {max_err}"

    print("KERNEL_OK")
</pallas_src>

<mosaic_0001>
module attributes {stable_mosaic.version = 11 : i64} {
  func.func @_matmul_bias_kernel(%arg0: i32, %arg1: i32, %arg2: memref<128x128xbf16, #tpu.memory_space<vmem>>, %arg3: memref<128x128xbf16, #tpu.memory_space<vmem>>, %arg4: memref<1x128xf32, #tpu.memory_space<vmem>>, %arg5: memref<128x128xbf16, #tpu.memory_space<vmem>>) attributes {dimension_semantics = [#tpu.dimension_semantics<parallel>, #tpu.dimension_semantics<parallel>], iteration_bounds = array<i64: 1, 1>, scalar_prefetch = 0 : i64, scratch_operands = 0 : i64, tpu.core_type = #tpu.core_type<tc>, window_params = [{transform_indices = @transform_0, window_bounds = array<i64: 128, 128>}, {pipeline_mode = #tpu.pipeline_mode<synchronous>, transform_indices = @transform_1, window_bounds = array<i64: 128, 128>}, {pipeline_mode = #tpu.pipeline_mode<synchronous>, transform_indices = @transform_2, window_bounds = array<i64: 1, 128>}, {transform_indices = @transform_3, window_bounds = array<i64: 128, 128>}]} {
    %c0 = arith.constant 0 : index
    %c0_0 = arith.constant 0 : index
    %0 = vector.load %arg2[%c0, %c0_0] : memref<128x128xbf16, #tpu.memory_space<vmem>>, vector<128x128xbf16>
    %c0_1 = arith.constant 0 : index
    %c0_2 = arith.constant 0 : index
    %1 = vector.load %arg3[%c0_1, %c0_2] : memref<128x128xbf16, #tpu.memory_space<vmem>>, vector<128x128xbf16>
    %cst = arith.constant dense<0.000000e+00> : vector<128x128xf32>
    %2 = tpu.matmul %0, %1, %cst {dimension_numbers = #tpu.dot_dimension_numbers<[1], [0], [0], [1], [0, 0, 1, 1], [], []>} : vector<128x128xbf16>, vector<128x128xbf16>, vector<128x128xf32> -> vector<128x128xf32>
    %c0_3 = arith.constant 0 : index
    %c0_4 = arith.constant 0 : index
    %3 = vector.load %arg4[%c0_3, %c0_4] : memref<1x128xf32, #tpu.memory_space<vmem>>, vector<1x128xf32>
    %4 = vector.broadcast %3 : vector<1x128xf32> to vector<128x128xf32>
    %5 = arith.addf %2, %4 : vector<128x128xf32>
    %6 = arith.truncf %5 : vector<128x128xf32> to vector<128x128xbf16>
    %c0_5 = arith.constant 0 : index
    %c0_6 = arith.constant 0 : index
    %7 = vector.load %arg5[%c0_5, %c0_6] : memref<128x128xbf16, #tpu.memory_space<vmem>>, vector<128x128xbf16>
    tpu.vector_store %arg5[%c0_5, %c0_6], %6 {strides = array<i32>} : memref<128x128xbf16, #tpu.memory_space<vmem>>, vector<128x128xbf16>,
    return
  }
  func.func @transform_0(%arg0: i32, %arg1: i32) -> (i32, i32) {
    %c0_i32 = arith.constant 0 : i32
    %c0_i32_0 = arith.constant 0 : i32
    return %arg0, %c0_i32 : i32, i32
  }
  func.func @transform_1(%arg0: i32, %arg1: i32) -> (i32, i32) {
    %c0_i32 = arith.constant 0 : i32
    %c0_i32_0 = arith.constant 0 : i32
    return %c0_i32, %arg1 : i32, i32
  }
  func.func @transform_2(%arg0: i32, %arg1: i32) -> (i32, i32) {
    %c0_i32 = arith.constant 0 : i32
    %c0_i32_0 = arith.constant 0 : i32
    return %c0_i32, %arg1 : i32, i32
  }
  func.func @transform_3(%arg0: i32, %arg1: i32) -> (i32, i32) {
    %c0_i32 = arith.constant 0 : i32
    return %arg0, %arg1 : i32, i32
  }
}

</mosaic_0001>

<llo_original>
// kernel: tpu_custom_call.1
$region0: #{tpu_custom_call.1}
  #allocation0 [shape = 'u32[]', space=smem, size = 0x4, offset = 0x4, fixed_abs, tag = 'smem constant byte address 0x4 - core index']
  #allocation1 [shape = 'u32[144,128]{1,0:T(1,128)}', space=vmem, size = 0x12000, scoped, tag = 'internal scratch']
  %s0 = inlined_call_operand.hbm [shape: bf16[128,128], index: 0, kind: input, shape index: {}]
  %s1 = inlined_call_operand.hbm [shape: bf16[128,128], index: 1, kind: input, shape index: {}]
  %s2 = inlined_call_operand.vmem [shape: f32[1,128], index: 2, kind: input, shape index: {}]
  %s3 = inlined_call_operand.hbm [shape: bf16[128,128], index: 3, kind: output, shape index: {}]
  %s4 = sld [smem:[#allocation0]]
  $region30: #{tpu_custom_call.1} parent=0
    _
  %s6 = ssub.s32 1, %s4
  %s7 = scalar_select 0, %s6, %s4
  $region1: #{tpu_custom_call.1} parent=0
    #allocation2 [shape = 'u8[32768]{0}', space=vmem, size = 0x8000, scoped, tag = 'input window, operand 0, single buffered']
    #allocation3 [shape = 's32[1]{0}', space=sflag, size = 0x4, scoped, tag = 'scoped memory for tpu_custom_call.1']
    #allocation4 [shape = 's32[1]{0}', space=sflag, size = 0x4, scoped, tag = 'scoped memory for tpu_custom_call.1']
    #allocation5 [shape = 'u8[32768]{0}', space=vmem, size = 0x8000, scoped, tag = 'input window, operand 1, single buffered']
    #allocation6 [shape = 's32[1]{0}', space=sflag, size = 0x4, scoped, tag = 'scoped memory for tpu_custom_call.1']
    #allocation7 [shape = 'u8[32768]{0}', space=vmem, size = 0x8000, scoped, tag = 'output window, operand 0, single buffered']
    %8 = vsyncpa [#allocation3], 0
    %9 = vsyncpa [#allocation6], 0
    %10 = vsyncpa [#allocation4], 0
    // Predicated region
    $region2: #{tpu_custom_call.1} parent=1 // pred_check
      _
    $region3: #{tpu_custom_call.1} parent=1 // pred_check_branch
      %12 = sbr.rel (0) target = $region5
    $region4: #{tpu_custom_call.1} parent=1 // pred_region
      %s14 = ssub.s32 1024, 1024
      %15 = vsyncadd [#allocation3], %s14
      %s16 = sshll.u32 [#allocation2], 4
      %s17 = int_to_ptr.vmem [resolvable:$true] %s16
      %22 = dma.hbm_to_vmem [thread:$0]  %s0, 1024, %s17, [#allocation3], 64, 64, 4
    $region5: #{tpu_custom_call.1} parent=1 // pred_fallthru
      _
    // Predicated region
    $region6: #{tpu_custom_call.1} parent=1 // pred_check
      _
    $region7: #{tpu_custom_call.1} parent=1 // pred_check_branch
      %24 = sbr.rel (0) target = $region9
    $region8: #{tpu_custom_call.1} parent=1 // pred_region
      %s26 = ssub.s32 1024, 1024
      %27 = vsyncadd [#allocation6], %s26
      %s28 = sshll.u32 [#allocation5], 4
      %s29 = int_to_ptr.vmem [resolvable:$true] %s28
      %34 = dma.hbm_to_vmem [thread:$0]  %s1, 1024, %s29, [#allocation6], 64, 64, 4
    $region9: #{tpu_custom_call.1} parent=1 // pred_fallthru
      _
    // Predicated region
    $region10: #{tpu_custom_call.1} parent=1 // pred_check
      _
    $region11: #{tpu_custom_call.1} parent=1 // pred_check_branch
      %36 = sbr.rel (0) target = $region13
    $region12: #{tpu_custom_call.1} parent=1 // pred_region
      _
    $region13: #{tpu_custom_call.1} parent=1 // pred_fallthru
      _
    // Predicated region
    $region14: #{tpu_custom_call.1} parent=1 // pred_check
      _
    $region15: #{tpu_custom_call.1} parent=1 // pred_check_branch
      %38 = sbr.rel (0) target = $region17
    $region16: #{tpu_custom_call.1} parent=1 // pred_region
      %39 = dma.done [#allocation3], 1024
    $region17: #{tpu_custom_call.1} parent=1 // pred_fallthru
      _
    // Predicated region
    $region18: #{tpu_custom_call.1} parent=1 // pred_check
      _
    $region19: #{tpu_custom_call.1} parent=1 // pred_check_branch
      %41 = sbr.rel (0) target = $region21
    $region20: #{tpu_custom_call.1} parent=1 // pred_region
      %42 = dma.done [#allocation6], 1024
    $region21: #{tpu_custom_call.1} parent=1 // pred_fallthru
      _
    %v44 = vld [vmem:[#allocation2] sm:$0xf]
    %v45 = vld [vmem:[#allocation2 + $0x4] sm:$0xf]
    %v46 = vld [vmem:[#allocation2 + $0x8] sm:$0xf]
    %v47 = vld [vmem:[#allocation2 + $0xc] sm:$0xf]
    %v48 = vld [vmem:[#allocation2 + $0x10] sm:$0xf]
    %v49 = vld [vmem:[#allocation2 + $0x14] sm:$0xf]
    %v50 = vld [vmem:[#allocation2 + $0x18] sm:$0xf]
    %v51 = vld [vmem:[#allocation2 + $0x1c] sm:$0xf]
    %v52 = vld [vmem:[#allocation2 + $0x20] sm:$0xf]
    %v53 = vld [vmem:[#allocation2 + $0x24] sm:$0xf]
    %v54 = vld [vmem:[#allocation2 + $0x28] sm:$0xf]
    %v55 = vld [vmem:[#allocation2 + $0x2c] sm:$0xf]
    %v56 = vld [vmem:[#allocation2 + $0x30] sm:$0xf]
    %v57 = vld [vmem:[#allocation2 + $0x34] sm:$0xf]
    %v58 = vld [vmem:[#allocation2 + $0x38] sm:$0xf]
    %v59 = vld [vmem:[#allocation2 + $0x3c] sm:$0xf]
    %v60 = vld [vmem:[#allocation5] sm:$0xf]
    %v61 = vld [vmem:[#allocation5 + $0x4] sm:$0xf]
    %v62 = vld [vmem:[#allocation5 + $0x8] sm:$0xf]
    %v63 = vld [vmem:[#allocation5 + $0xc] sm:$0xf]
    %v64 = vld [vmem:[#allocation5 + $0x10] sm:$0xf]
    %v65 = vld [vmem:[#allocation5 + $0x14] sm:$0xf]
    %v66 = vld [vmem:[#allocation5 + $0x18] sm:$0xf]
    %v67 = vld [vmem:[#allocation5 + $0x1c] sm:$0xf]
    %v68 = vld [vmem:[#allocation5 + $0x20] sm:$0xf]
    %v69 = vld [vmem:[#allocation5 + $0x24] sm:$0xf]
    %v70 = vld [vmem:[#allocation5 + $0x28] sm:$0xf]
    %v71 = vld [vmem:[#allocation5 + $0x2c] sm:$0xf]
    %v72 = vld [vmem:[#allocation5 + $0x30] sm:$0xf]
    %v73 = vld [vmem:[#allocation5 + $0x34] sm:$0xf]
    %v74 = vld [vmem:[#allocation5 + $0x38] sm:$0xf]
    %v75 = vld [vmem:[#allocation5 + $0x3c] sm:$0xf]
    %v76 = vld [vmem:[%s2] sm:$0x1]
    %v78 = vlaneseq
    %v79 = vshrl.u32 %v78, 7
    %v80 = vsub.s32 0, %v79
    %v81 = vrot.slane %v76, %v80
    %v99 = vunpack.c.l.b16 %v44
    %v100 = vunpack.c.l.b16 %v45
    %v101 = vunpack.c.l.b16 %v46
    %v102 = vunpack.c.l.b16 %v47
    %v103 = vunpack.c.l.b16 %v48
    %v104 = vunpack.c.l.b16 %v49
    %v105 = vunpack.c.l.b16 %v50
    %v106 = vunpack.c.l.b16 %v51
    %v107 = vunpack.c.l.b16 %v52
    %v108 = vunpack.c.l.b16 %v53
    %v109 = vunpack.c.l.b16 %v54
    %v110 = vunpack.c.l.b16 %v55
    %v111 = vunpack.c.l.b16 %v56
    %v112 = vunpack.c.l.b16 %v57
    %v113 = vunpack.c.l.b16 %v58
    %v114 = vunpack.c.l.b16 %v59
    %v115 = vpack.c.b16 %v100, %v99
    %v116 = vpack.c.b16 %v102, %v101
    %v117 = vpack.c.b16 %v104, %v103
    %v118 = vpack.c.b16 %v106, %v105
    %v119 = vpack.c.b16 %v108, %v107
    %v120 = vpack.c.b16 %v110, %v109
    %v121 = vpack.c.b16 %v112, %v111
    %v122 = vpack.c.b16 %v114, %v113
    %v147 = vunpack.c.l.b16 %v60
    %v148 = vunpack.c.l.b16 %v61
    %v149 = vunpack.c.l.b16 %v62
    %v150 = vunpack.c.l.b16 %v63
    %v151 = vunpack.c.l.b16 %v64
    %v152 = vunpack.c.l.b16 %v65
    %v153 = vunpack.c.l.b16 %v66
    %v154 = vunpack.c.l.b16 %v67
    %v155 = vunpack.c.l.b16 %v68
    %v156 = vunpack.c.l.b16 %v69
    %v157 = vunpack.c.l.b16 %v70
    %v158 = vunpack.c.l.b16 %v71
    %v159 = vunpack.c.l.b16 %v72
    %v160 = vunpack.c.l.b16 %v73
    %v161 = vunpack.c.l.b16 %v74
    %v162 = vunpack.c.l.b16 %v75
    %v163 = vpack.c.b16 %v148, %v147
    %v164 = vpack.c.b16 %v150, %v149
    %v165 = vpack.c.b16 %v152, %v151
    %v166 = vpack.c.b16 %v154, %v153
    %v167 = vpack.c.b16 %v156, %v155
    %v168 = vpack.c.b16 %v158, %v157
    %v169 = vpack.c.b16 %v160, %v159
    %v170 = vpack.c.b16 %v162, %v161
    %179 = vmatprep.subr.bf16.mxu0 0
    %180 = vmatpush1.bf16.msra.mxu0 %v163
    %181 = vmatprep.subr.bf16.mxu0 0
    %182 = vmatpush1.bf16.msra.mxu0 %v164
    %183 = vmatprep.subr.bf16.mxu0 0
    %184 = vmatpush1.bf16.msra.mxu0 %v165
    %185 = vmatprep.subr.bf16.mxu0 0
    %186 = vmatpush1.bf16.msra.mxu0 %v166
    %187 = vmatprep.subr.bf16.mxu0 0
    %188 = vmatpush1.bf16.msra.mxu0 %v167
    %189 = vmatprep.subr.bf16.mxu0 0
    %190 = vmatpush1.bf16.msra.mxu0 %v168
    %191 = vmatprep.subr.bf16.mxu0 0
    %192 = vmatpush1.bf16.msra.mxu0 %v169
    %193 = vmatprep.subr.bf16.mxu0 0
    %194 = vmatpush1.bf16.msra.mxu0 %v170
    %195 = vmatprep.subr.bf16.mxu0 0
    %196 = vmatpush1.bf16.msra.mxu0 0
    %197 = vmatprep.subr.bf16.mxu0 0
    %198 = vmatpush1.bf16.msra.mxu0 0
    %199 = vmatprep.subr.bf16.mxu0 0
    %200 = vmatpush1.bf16.msra.mxu0 0
    %201 = vmatprep.subr.bf16.mxu0 0
    %202 = vmatpush1.bf16.msra.mxu0 0
    %203 = vmatprep.subr.bf16.mxu0 0
    %204 = vmatpush1.bf16.msra.mxu0 0
    %205 = vmatprep.subr.bf16.mxu0 0
    %206 = vmatpush1.bf16.msra.mxu0 0
    %207 = vmatprep.subr.bf16.mxu0 0
    %208 = vmatpush1.bf16.msra.mxu0 0
    %209 = vmatprep.subr.bf16.mxu0 0
    %210 = vmatpush1.bf16.msra.mxu0 0
    %211 = vmatprep.mubr.bf16.mxu0 0
    %212 = vmatmul.mubr.bf16.gmra.mrb[0].mxu0 %v115
    %v213 = vpop.f32.mrb[0].mxu0
    %v214 = vadd.f32 %v81, %v213
    %v215 = vpop.f32.mrb[0].mxu0
    %v216 = vpop.f32.mrb[0].mxu0
    %v217 = vadd.f32 %v81, %v216
    %v218 = vpop.f32.mrb[0].mxu0
    %219 = vmatprep.mubr.bf16.mxu0 0
    %220 = vmatmul.mubr.bf16.gmra.mrb[0].mxu0 %v116
    %v221 = vpop.f32.mrb[0].mxu0
    %v222 = vadd.f32 %v81, %v221
    %v223 = vpop.f32.mrb[0].mxu0
    %v224 = vpop.f32.mrb[0].mxu0
    %v225 = vadd.f32 %v81, %v224
    %v226 = vpop.f32.mrb[0].mxu0
    %227 = vmatprep.mubr.bf16.mxu0 0
    %228 = vmatmul.mubr.bf16.gmra.mrb[0].mxu0 %v117
    %v229 = vpop.f32.mrb[0].mxu0
    %v230 = vadd.f32 %v81, %v229
    %v231 = vpop.f32.mrb[0].mxu0
    %v232 = vpop.f32.mrb[0].mxu0
    %v233 = vadd.f32 %v81, %v232
    %v234 = vpop.f32.mrb[0].mxu0
    %235 = vmatprep.mubr.bf16.mxu0 0
    %236 = vmatmul.mubr.bf16.gmra.mrb[0].mxu0 %v118
    %v237 = vpop.f32.mrb[0].mxu0
    %v238 = vadd.f32 %v81, %v237
    %v239 = vpop.f32.mrb[0].mxu0
    %v240 = vpop.f32.mrb[0].mxu0
    %v241 = vadd.f32 %v81, %v240
    %v242 = vpop.f32.mrb[0].mxu0
    %243 = vmatprep.mubr.bf16.mxu0 0
    %244 = vmatmul.mubr.bf16.gmra.mrb[0].mxu0 %v119
    %v245 = vpop.f32.mrb[0].mxu0
    %v246 = vadd.f32 %v81, %v245
    %v247 = vpop.f32.mrb[0].mxu0
    %v248 = vpop.f32.mrb[0].mxu0
    %v249 = vadd.f32 %v81, %v248
    %v250 = vpop.f32.mrb[0].mxu0
    %251 = vmatprep.mubr.bf16.mxu0 0
    %252 = vmatmul.mubr.bf16.gmra.mrb[0].mxu0 %v120
    %v253 = vpop.f32.mrb[0].mxu0
    %v254 = vadd.f32 %v81, %v253
    %v255 = vpop.f32.mrb[0].mxu0
    %v256 = vpop.f32.mrb[0].mxu0
    %v257 = vadd.f32 %v81, %v256
    %v258 = vpop.f32.mrb[0].mxu0
    %259 = vmatprep.mubr.bf16.mxu0 0
    %260 = vmatmul.mubr.bf16.gmra.mrb[0].mxu0 %v121
    %v261 = vpop.f32.mrb[0].mxu0
    %v262 = vadd.f32 %v81, %v261
    %v263 = vpop.f32.mrb[0].mxu0
    %v264 = vpop.f32.mrb[0].mxu0
    %v265 = vadd.f32 %v81, %v264
    %v266 = vpop.f32.mrb[0].mxu0
    %267 = vmatprep.mubr.bf16.mxu0 0
    %268 = vmatmul.mubr.bf16.gmra.mrb[0].mxu0 %v122
    %v269 = vpop.f32.mrb[0].mxu0
    %v270 = vadd.f32 %v81, %v269
    %v271 = vpop.f32.mrb[0].mxu0
    %v272 = vpop.f32.mrb[0].mxu0
    %v273 = vadd.f32 %v81, %v272
    %v274 = vpop.f32.mrb[0].mxu0
    %275 = vdwg.mxu0
    %v276 = vpack.c.bf16 %v217, %v214
    %v277 = vpack.c.bf16 %v225, %v222
    %v278 = vpack.c.bf16 %v233, %v230
    %v279 = vpack.c.bf16 %v241, %v238
    %v280 = vpack.c.bf16 %v249, %v246
    %v281 = vpack.c.bf16 %v257, %v254
    %v282 = vpack.c.bf16 %v265, %v262
    %v283 = vpack.c.bf16 %v273, %v270
    %v292 = vunpack.c.l.b16 %v276
    %v293 = vunpack.c.h.b16 %v276
    %v294 = vunpack.c.l.b16 %v277
    %v295 = vunpack.c.h.b16 %v277
    %v296 = vunpack.c.l.b16 %v278
    %v297 = vunpack.c.h.b16 %v278
    %v298 = vunpack.c.l.b16 %v279
    %v299 = vunpack.c.h.b16 %v279
    %v300 = vunpack.c.l.b16 %v280
    %v301 = vunpack.c.h.b16 %v280
    %v302 = vunpack.c.l.b16 %v281
    %v303 = vunpack.c.h.b16 %v281
    %v304 = vunpack.c.l.b16 %v282
    %v305 = vunpack.c.h.b16 %v282
    %v306 = vunpack.c.l.b16 %v283
    %v307 = vunpack.c.h.b16 %v283
    %v308 = vpack.c.b16 %v292, %v292
    %v309 = vpack.c.b16 %v293, %v293
    %v310 = vpack.c.b16 %v294, %v294
    %v311 = vpack.c.b16 %v295, %v295
    %v312 = vpack.c.b16 %v296, %v296
    %v313 = vpack.c.b16 %v297, %v297
    %v314 = vpack.c.b16 %v298, %v298
    %v315 = vpack.c.b16 %v299, %v299
    %v316 = vpack.c.b16 %v300, %v300
    %v317 = vpack.c.b16 %v301, %v301
    %v318 = vpack.c.b16 %v302, %v302
    %v319 = vpack.c.b16 %v303, %v303
    %v320 = vpack.c.b16 %v304, %v304
    %v321 = vpack.c.b16 %v305, %v305
    %v322 = vpack.c.b16 %v306, %v306
    %v323 = vpack.c.b16 %v307, %v307
    %340 = vst [vmem:[#allocation7] sm:$0xf] %v308
    %341 = vst [vmem:[#allocation7 + $0x4] sm:$0xf] %v309
    %342 = vst [vmem:[#allocation7 + $0x8] sm:$0xf] %v310
    %343 = vst [vmem:[#allocation7 + $0xc] sm:$0xf] %v311
    %344 = vst [vmem:[#allocation7 + $0x10] sm:$0xf] %v312
    %345 = vst [vmem:[#allocation7 + $0x14] sm:$0xf] %v313
    %346 = vst [vmem:[#allocation7 + $0x18] sm:$0xf] %v314
    %347 = vst [vmem:[#allocation7 + $0x1c] sm:$0xf] %v315
    %348 = vst [vmem:[#allocation7 + $0x20] sm:$0xf] %v316
    %349 = vst [vmem:[#allocation7 + $0x24] sm:$0xf] %v317
    %350 = vst [vmem:[#allocation7 + $0x28] sm:$0xf] %v318
    %351 = vst [vmem:[#allocation7 + $0x2c] sm:$0xf] %v319
    %352 = vst [vmem:[#allocation7 + $0x30] sm:$0xf] %v320
    %353 = vst [vmem:[#allocation7 + $0x34] sm:$0xf] %v321
    %354 = vst [vmem:[#allocation7 + $0x38] sm:$0xf] %v322
    %355 = vst [vmem:[#allocation7 + $0x3c] sm:$0xf] %v323
    // Predicated region
    $region22: #{tpu_custom_call.1} parent=1 // pred_check
      _
    $region23: #{tpu_custom_call.1} parent=1 // pred_check_branch
      %357 = sbr.rel (0) target = $region25
    $region24: #{tpu_custom_call.1} parent=1 // pred_region
      %s359 = ssub.s32 1024, 1024
      %360 = vsyncadd [#allocation4], %s359
      %s361 = sshll.u32 [#allocation7], 4
      %s362 = int_to_ptr.vmem [resolvable:$true] %s361
      %367 = dma.vmem_to_hbm [thread:$0]  %s362, 1024, %s3, [#allocation4], 64, 64, 4
    $region25: #{tpu_custom_call.1} parent=1 // pred_fallthru
      _
    // Predicated region
    $region26: #{tpu_custom_call.1} parent=1 // pred_check
      _
    $region27: #{tpu_custom_call.1} parent=1 // pred_check_branch
      %369 = sbr.rel (0) target = $region29
    $region28: #{tpu_custom_call.1} parent=1 // pred_region
      %370 = dma.done [#allocation4], 1024
    $region29: #{tpu_custom_call.1} parent=1 // pred_fallthru
      _
    %371 = vsyncpa [#allocation3], 1
    %372 = vsyncpa [#allocation6], 1
    %373 = vsyncpa [#allocation4], 1

</llo_original>
